<compile_context>
chip_gen: v7x
topology: tpu7x:2x2x1
jax: 0.10.0
libtpu: 0.0.40
codegen_flags: <defaults>
</compile_context>

<pallas_src>
import jax
import jax.numpy as jnp
from jax import lax
from jax.experimental import pallas as pl
from jax.experimental.pallas import tpu as pltpu


def _round_up(x, n):
    return (x + n - 1) // n * n


# -----------------------------------------------------------------------------
# pltpu.roll shift-convention probe (run once on-device, cached).  The kernel
# only ever needs "gather the value `s` lanes to the right":
#   result[:, o] = v[:, (o + s) % M]
# -----------------------------------------------------------------------------
_ROLL_SIGN = []


def _roll_shift_sign():
    """+1 if pltpu.roll matches jnp.roll (out[i] = x[i - shift]), else -1."""
    if not _ROLL_SIGN:
        def probe(x_ref, o_ref):
            o_ref[...] = pltpu.roll(x_ref[...], 1, axis=1)

        x = jnp.tile(jnp.arange(128, dtype=jnp.float32)[None, :], (8, 1))
        r = pl.pallas_call(
            probe, out_shape=jax.ShapeDtypeStruct((8, 128), jnp.float32))(x)
        _ROLL_SIGN.append(1 if float(jax.device_get(r)[0, 1]) == 0.0 else -1)
    return _ROLL_SIGN[0]


# Polyphase tap mapping for a k=3, pad=1 conv whose input is stored as a 2x2
# parity decomposition: (output parity p, kernel offset d) -> (input parity q,
# phase-local shift).
_PHASE_TAP = {
    (0, 0): (1, -1), (0, 1): (0, 0), (0, 2): (1, 0),
    (1, 0): (0, 0), (1, 1): (1, 0), (1, 2): (0, 1),
}


# -----------------------------------------------------------------------------
# Public wrapper (NCHW in / NCHW out, matching the PyTorch reference)
# -----------------------------------------------------------------------------
def output_upsampler_pallas(params, x_nchw):
    n, cin, h, w = x_nchw.shape
    cmid = params["g1"].shape[0]                        # 12
    cout = params["g3"].shape[0]                        # 6
    cb = max(_round_up(cin, 8), _round_up(cmid, 8))     # 16: block rows, stages 1-2
    cob = _round_up(cout, 8)                            # 8:  block rows, stage 3
    f32 = jnp.float32

    # Flattened per-image layout: the stage-1 padded-input grid (Hp, Wp).  The
    # same grid hosts every later intermediate (valid region (Ho1, Wo1) at the
    # origin, zeros elsewhere), so conv "padding" reads are roll wrap-arounds
    # into zeroed lanes and no padded tensor is ever rebuilt in-kernel.
    hp, wp = h + 6, w + 2
    ho1, wo1 = h + 2, w
    m = n * hp * wp
    mp = _round_up(m, 128)
    cnt1 = float(n * ho1 * wo1)                         # BN population, stage 1
    cnt23 = 4.0 * cnt1                                  # BN population, stages 2/3

    roll_sign = _roll_shift_sign()

    # ---------------- packed input operand: padded channel-major input + mask
    xc = jnp.transpose(x_nchw.astype(f32), (1, 0, 2, 3))            # (Cin,N,H,W)
    xpad = jnp.pad(xc, ((0, 0), (0, 0), (3, 3), (1, 1)))            # (Cin,N,Hp,Wp)
    xflat = jnp.pad(xpad.reshape(cin, m), ((0, cb - cin), (0, mp - m)))
    pos = jnp.arange(hp * wp, dtype=jnp.int32)
    img_mask = ((pos // wp < ho1) & (pos % wp < wo1)).astype(f32)
    mask = jnp.pad(jnp.tile(img_mask, (n,)), (0, mp - m)).reshape(1, mp)
    xm = jnp.concatenate([xflat, mask], axis=0)                     # (cb+1, Mp)

    # ---------------- packed weight / BN-parameter slab (single operand)
    # stage 1 taps: slab[(di*3+dj)*cb + co, ci] = w1[ci, co, 4-di, 2-dj]
    w1 = params["w1"].astype(f32)
    w1s = jnp.transpose(w1[:, :, ::-1, ::-1], (2, 3, 1, 0))
    w1s = jnp.pad(w1s, ((0, 0), (0, 0), (0, cb - cmid), (0, cb - cin)))
    w1s = w1s.reshape(15 * cb, cb)
    # stage 2 taps: slab[(ki*5+kj)*cb + co, ci] = w2[ci, co, ki, kj]
    w2 = params["w2"].astype(f32)
    w2s = jnp.transpose(w2, (2, 3, 1, 0))
    w2s = jnp.pad(w2s, ((0, 0), (0, 0), (0, cb - cmid), (0, cb - cmid)))
    w2s = w2s.reshape(25 * cb, cb)
    # stage 3 taps: slab[(di*3+dj)*cob + co, ci] = w3[co, ci, di, dj]
    w3 = params["w3"].astype(f32)
    w3s = jnp.transpose(w3, (2, 3, 0, 1))
    w3s = jnp.pad(w3s, ((0, 0), (0, 0), (0, cob - cout), (0, cb - cmid)))
    w3s = w3s.reshape(9 * cob, cb)

    # BN params in columns [g1 b1 g2 b2 g3 b3]; zero-padded channels get
    # gamma = beta = 0, so they stay exactly zero through BN+ReLU.
    def _col(v):
        return jnp.pad(v.astype(f32), (0, cb - v.shape[0])).reshape(cb, 1)

    bnp = jnp.concatenate(
        [_col(params["g1"]), _col(params["be1"]),
         _col(params["g2"]), _col(params["be2"]),
         _col(params["g3"]), _col(params["be3"]),
         jnp.zeros((cb, cb - 6), f32)], axis=1)
    wslab = jnp.concatenate([w1s, w2s, w3s, bnp], axis=0)           # (728, 16)

    o1, o2 = 0, 15 * cb
    o3, obn = 40 * cb, 40 * cb + 9 * cob

    def shift(v, s):
        """result[:, o] = v[:, (o + s) % Mp]   (wraps land in zeroed lanes)."""
        amt = ((-s) if roll_sign == 1 else s) % mp
        if amt == 0:
            return v
        return pltpu.roll(v, amt, axis=1)

    def kernel(xm_ref, w_ref, o_ref):
        x = xm_ref[0:cb, :]                    # (16, Mp) padded input, ch-major
        mask_v = xm_ref[cb:cb + 1, :]          # (1, Mp)  valid-output lanes
        bnpar = w_ref[obn:obn + cb, :]         # (16, 16) packed BN params

        def stats(blocks, count):
            # single-pass masked batch statistics (sum + sum-of-squares)
            s1 = sum(jnp.sum(b * mask_v, axis=1, keepdims=True) for b in blocks)
            s2 = sum(jnp.sum((b * mask_v) * b, axis=1, keepdims=True)
                     for b in blocks)
            mean = s1 * (1.0 / count)
            var = s2 * (1.0 / count) - mean * mean
            return mean, var

        # ---- stage 1: ConvTranspose2d(k=(5,3), s=1, p=(1,1)) + BN + ReLU.
        # One matmul projects x through all 15 taps; each tap block is then a
        # lane roll (output-side im2col: no patch matrix, no concats).
        p1 = jnp.dot(w_ref[o1:o1 + 15 * cb, :], x,
                     preferred_element_type=jnp.float32)            # (240, Mp)
        acc = jnp.zeros((cb, mp), jnp.float32)
        for di in range(5):
            for dj in range(3):
                t = di * 3 + dj
                acc = acc + shift(p1[t * cb:(t + 1) * cb, :], di * wp + dj)
        mean, var = stats([acc], cnt1)
        y1 = jnp.maximum((acc - mean) * (lax.rsqrt(var + 1e-5) * bnpar[:, 0:1])
                         + bnpar[:, 1:2], 0.0) * mask_v             # (16, Mp)

        # ---- stage 2: ConvTranspose2d(k=5, s=2, p=2, op=1) + BN + ReLU,
        # as a 2x2 polyphase decomposition on the undilated y1.
        p2 = jnp.dot(w_ref[o2:o2 + 25 * cb, :], y1,
                     preferred_element_type=jnp.float32)            # (400, Mp)
        acc2 = []
        for pi in range(2):
            for pj in range(2):
                a = jnp.zeros((cb, mp), jnp.float32)
                for ki in range(pi, 5, 2):
                    for kj in range(pj, 5, 2):
                        t = ki * 5 + kj
                        s = ((1 - (ki - pi) // 2) * wp
                             + (1 - (kj - pj) // 2))
                        a = a + shift(p2[t * cb:(t + 1) * cb, :], s)
                acc2.append(a)
        mean, var = stats(acc2, cnt23)
        scale = lax.rsqrt(var + 1e-5) * bnpar[:, 2:3]
        beta = bnpar[:, 3:4]
        y2 = [jnp.maximum((a - mean) * scale + beta, 0.0) * mask_v for a in acc2]

        # ---- stage 3: Conv2d(k=3, p=1) + BN(eps=0.1) + ReLU, also polyphase
        # (each output parity mixes taps from all 4 stage-2 parity slabs).
        p3 = [jnp.dot(w_ref[o3:o3 + 9 * cob, :], y2q,
                      preferred_element_type=jnp.float32)           # (72, Mp)
              for y2q in y2]
        acc3 = []
        for pi in range(2):
            for pj in range(2):
                a = jnp.zeros((cob, mp), jnp.float32)
                for di in range(3):
                    for dj in range(3):
                        qi, da = _PHASE_TAP[(pi, di)]
                        qj, db = _PHASE_TAP[(pj, dj)]
                        t = di * 3 + dj
                        a = a + shift(p3[qi * 2 + qj][t * cob:(t + 1) * cob, :],
                                      da * wp + db)
                acc3.append(a)
        mean, var = stats(acc3, cnt23)
        scale = lax.rsqrt(var + 0.1) * bnpar[0:cob, 4:5]
        beta = bnpar[0:cob, 5:6]
        for idx, a in enumerate(acc3):
            o_ref[idx] = jnp.maximum((a - mean) * scale + beta, 0.0)

    def full_spec(arr):
        zeros = (0,) * arr.ndim
        return pl.BlockSpec(arr.shape, lambda i: zeros)

    operands = (xm, wslab)
    out = pl.pallas_call(
        kernel,
        out_shape=jax.ShapeDtypeStruct((4, cob, mp), f32),
        grid=(1,),
        in_specs=[full_spec(a) for a in operands],
        out_specs=pl.BlockSpec((4, cob, mp), lambda i: (0, 0, 0)),
        compiler_params=pltpu.CompilerParams(
            dimension_semantics=("arbitrary",)),
    )(*operands)

    # De-interleave the 2x2 polyphase output and crop the padded layout
    # (tiny wrapper-side XLA on ~27 KB).
    out = out[:, :cout, :m].reshape(2, 2, cout, n, hp, wp)[..., :ho1, :wo1]
    out = jnp.transpose(out, (3, 2, 4, 0, 5, 1))
    return out.reshape(n, cout, 2 * ho1, 2 * wo1)


# -----------------------------------------------------------------------------
# Pure-XLA reference with exact PyTorch semantics (incl. conv biases, which are
# mathematically cancelled by the training-mode BatchNorm that follows each conv)
# -----------------------------------------------------------------------------
def _bn_relu_ref(x, gamma, beta, eps):
    mean = jnp.mean(x, axis=(0, 1, 2))
    var = jnp.mean(jnp.square(x - mean), axis=(0, 1, 2))
    return jnp.maximum((x - mean) * lax.rsqrt(var + eps) * gamma + beta, 0.0)


def output_upsampler_ref(params, x_nchw):
    dn = ("NHWC", "HWIO", "NHWC")
    x = jnp.transpose(x_nchw, (0, 2, 3, 1)).astype(jnp.float32)

    w1 = jnp.transpose(jnp.flip(params["w1"], axis=(2, 3)), (2, 3, 0, 1))
    y = lax.conv_general_dilated(x, w1, (1, 1), ((3, 3), (1, 1)),
                                 dimension_numbers=dn) + params["b1"]
    y = _bn_relu_ref(y, params["g1"], params["be1"], 1e-5)

    w2 = jnp.transpose(jnp.flip(params["w2"], axis=(2, 3)), (2, 3, 0, 1))
    y = lax.conv_general_dilated(y, w2, (1, 1), ((2, 3), (2, 3)),
                                 lhs_dilation=(2, 2),
                                 dimension_numbers=dn) + params["b2"]
    y = _bn_relu_ref(y, params["g2"], params["be2"], 1e-5)

    w3 = jnp.transpose(params["w3"], (2, 3, 1, 0))
    y = lax.conv_general_dilated(y, w3, (1, 1), ((1, 1), (1, 1)),
                                 dimension_numbers=dn) + params["b3"]
    y = _bn_relu_ref(y, params["g3"], params["be3"], 0.1)
    return jnp.transpose(y, (0, 3, 1, 2))


# -----------------------------------------------------------------------------
# Deterministic parameter construction (PyTorch tensor layouts)
# -----------------------------------------------------------------------------
def init_params(key, in_channels=16, out_channels=6):
    mid = (in_channels + out_channels) // 2
    mid = mid + 1 if mid % 2 != 0 else mid
    ks = jax.random.split(key, 6)

    def u(k, shape, fan_in):
        bound = 1.0 / jnp.sqrt(jnp.float32(fan_in))
        return jax.random.uniform(k, shape, jnp.float32, -bound, bound)

    return dict(
        w1=u(ks[0], (in_channels, mid, 5, 3), in_channels * 5 * 3),
        b1=u(ks[1], (mid,), in_channels * 5 * 3),
        w2=u(ks[2], (mid, mid, 5, 5), mid * 5 * 5),
        b2=u(ks[3], (mid,), mid * 5 * 5),
        w3=u(ks[4], (out_channels, mid, 3, 3), mid * 3 * 3),
        b3=u(ks[5], (out_channels,), mid * 3 * 3),
        g1=jnp.ones((mid,), jnp.float32), be1=jnp.zeros((mid,), jnp.float32),
        g2=jnp.ones((mid,), jnp.float32), be2=jnp.zeros((mid,), jnp.float32),
        g3=jnp.ones((out_channels,), jnp.float32),
        be3=jnp.zeros((out_channels,), jnp.float32),
    )


if __name__ == "__main__":
    key = jax.random.PRNGKey(0)
    pkey, xkey = jax.random.split(key)
    params = init_params(pkey, in_channels=16, out_channels=6)

    # NCHW input for OutputUpsampler(in_channels=16): batch=2, 16 ch, 8x8 spatial
    x = jax.random.normal(xkey, (2, 16, 8, 8), jnp.float32)

    _roll_shift_sign()  # resolve pltpu.roll's shift convention once, outside jit

    fwd = jax.jit(output_upsampler_pallas)
    out = jax.block_until_ready(fwd(params, x))
    assert out.shape == (2, 6, 20, 16), out.shape

    out_ref = jax.block_until_ready(jax.jit(output_upsampler_ref)(params, x))
    err = float(jnp.max(jnp.abs(out - out_ref)))
    assert err < 1e-3, err

    print("KERNEL_OK")
</pallas_src>

<mosaic_0001>
module attributes {stable_mosaic.version = 11 : i64} {
  func.func @probe(%arg0: memref<8x128xf32, #tpu.memory_space<vmem>>, %arg1: memref<8x128xf32, #tpu.memory_space<vmem>>) attributes {dimension_semantics = [], scalar_prefetch = 0 : i64, scratch_operands = 0 : i64, tpu.core_type = #tpu.core_type<tc>} {
    %c0 = arith.constant 0 : index
    %c0_0 = arith.constant 0 : index
    %0 = vector.load %arg0[%c0, %c0_0] : memref<8x128xf32, #tpu.memory_space<vmem>>, vector<8x128xf32>
    %c1_i32 = arith.constant 1 : i32
    %1 = tpu.dynamic_rotate %0 by %c1_i32 dim 1 : vector<8x128xf32>, i32 -> vector<8x128xf32>
    %c0_1 = arith.constant 0 : index
    %c0_2 = arith.constant 0 : index
    %2 = vector.load %arg1[%c0_1, %c0_2] : memref<8x128xf32, #tpu.memory_space<vmem>>, vector<8x128xf32>
    tpu.vector_store %arg1[%c0_1, %c0_2], %1 {strides = array<i32>} : memref<8x128xf32, #tpu.memory_space<vmem>>, vector<8x128xf32>,
    return
  }
}

</mosaic_0001>

<llo_original>
// kernel: tpu_custom_call.1
$region0: #{tpu_custom_call.1}
  #allocation0 [shape = 'u32[]', space=smem, size = 0x4, offset = 0x4, fixed_abs, tag = 'smem constant byte address 0x4 - core index']
  #allocation1 [shape = 'u32[144,128]{1,0:T(1,128)}', space=vmem, size = 0x12000, scoped, tag = 'internal scratch']
  %s0 = inlined_call_operand.hbm [shape: f32[8,128], index: 0, kind: input, shape index: {}]
  %s1 = inlined_call_operand.hbm [shape: f32[8,128], index: 1, kind: output, shape index: {}]
  %s2 = sld [smem:[#allocation0]]
  $region18: #{tpu_custom_call.1} parent=0
    _
  %s4 = ssub.s32 1, %s2
  %s5 = scalar_select 0, %s4, %s2
  $region1: #{tpu_custom_call.1} parent=0
    #allocation2 [shape = 'u8[4096]{0}', space=vmem, size = 0x1000, scoped, tag = 'input window, operand 0, single buffered']
    #allocation3 [shape = 's32[1]{0}', space=sflag, size = 0x4, scoped, tag = 'scoped memory for tpu_custom_call.1']
    #allocation4 [shape = 's32[1]{0}', space=sflag, size = 0x4, scoped, tag = 'scoped memory for tpu_custom_call.1']
    #allocation5 [shape = 'u8[4096]{0}', space=vmem, size = 0x1000, scoped, tag = 'output window, operand 0, single buffered']
    %6 = vsyncpa [#allocation3], 0
    %7 = vsyncpa [#allocation4], 0
    // Predicated region
    $region2: #{tpu_custom_call.1} parent=1 // pred_check
      _
    $region3: #{tpu_custom_call.1} parent=1 // pred_check_branch
      %9 = sbr.rel (0) target = $region5
    $region4: #{tpu_custom_call.1} parent=1 // pred_region
      %s11 = ssub.s32 128, 128
      %12 = vsyncadd [#allocation3], %s11
      %s14 = sshll.u32 [#allocation2], 4
      %s15 = int_to_ptr.vmem [resolvable:$true] %s14
      %17 = dma.hbm_to_vmem [thread:$0]  %s0, 128, %s15, [#allocation3]
    $region5: #{tpu_custom_call.1} parent=1 // pred_fallthru
      _
    // Predicated region
    $region6: #{tpu_custom_call.1} parent=1 // pred_check
      _
    $region7: #{tpu_custom_call.1} parent=1 // pred_check_branch
      %19 = sbr.rel (0) target = $region9
    $region8: #{tpu_custom_call.1} parent=1 // pred_region
      %20 = dma.done [#allocation3], 128
    $region9: #{tpu_custom_call.1} parent=1 // pred_fallthru
      _
    %v21 = vld [vmem:[#allocation2] sm:$0xff]
    %22 = vrot.lane.b32.xlu0 %v21, 1
    %v23 = vpop.permute.xlu0 %22
    %24 = vst [vmem:[#allocation5] sm:$0xff] %v23
    // Predicated region
    $region10: #{tpu_custom_call.1} parent=1 // pred_check
      _
    $region11: #{tpu_custom_call.1} parent=1 // pred_check_branch
      %26 = sbr.rel (0) target = $region13
    $region12: #{tpu_custom_call.1} parent=1 // pred_region
      %s28 = ssub.s32 128, 128
      %29 = vsyncadd [#allocation4], %s28
      %s31 = sshll.u32 [#allocation5], 4
      %s32 = int_to_ptr.vmem [resolvable:$true] %s31
      %34 = dma.vmem_to_hbm [thread:$0]  %s32, 128, %s1, [#allocation4]
    $region13: #{tpu_custom_call.1} parent=1 // pred_fallthru
      _
    // Predicated region
    $region14: #{tpu_custom_call.1} parent=1 // pred_check
      _
    $region15: #{tpu_custom_call.1} parent=1 // pred_check_branch
      %36 = sbr.rel (0) target = $region17
    $region16: #{tpu_custom_call.1} parent=1 // pred_region
      %37 = dma.done [#allocation4], 128
    $region17: #{tpu_custom_call.1} parent=1 // pred_fallthru
      _
    %38 = vsyncpa [#allocation3], 1
    %39 = vsyncpa [#allocation4], 1

</llo_original>
